<compile_context>
chip_gen: v5e
topology: v5e:2x2
jax: 0.10.0
libtpu: 0.0.40
codegen_flags: <defaults>
</compile_context>

<pallas_src>
import functools

import jax
import jax.numpy as jnp
from jax.experimental import pallas as pl
from jax.experimental.pallas import tpu as pltpu

_LANES = 128
_BLOCK_VMEM_BUDGET = 32 * 1024 * 1024   # shared by (streams x 2 pipeline buffers)
_VMEM_LIMIT = 48 * 1024 * 1024          # scoped VMEM; safe on v5e/v6e (128 MiB) and v7x (64 MiB)
_MIN_GRID = 4                           # target >=2 (ideally 4) blocks -> 2-TC split + pipelining


# ---------------------------------------------------------------------------
# Kernels (elementwise hot path; f32 math regardless of I/O dtype)
# ---------------------------------------------------------------------------
def _act_fwd_kernel(x_ref, o_ref):
    # forward: tanh(x)   (EUP transcendental)
    x = x_ref[...].astype(jnp.float32)
    o_ref[...] = jnp.tanh(x).astype(o_ref.dtype)


def _act_bwd_kernel(x_ref, d_ref, o_ref):
    # backward_delta from x: (1 - tanh(x)^2) * delta
    x = x_ref[...].astype(jnp.float32)
    d = d_ref[...].astype(jnp.float32)
    t = jnp.tanh(x)
    o_ref[...] = ((1.0 - t * t) * d).astype(o_ref.dtype)


def _act_bwd_from_y_kernel(y_ref, d_ref, o_ref):
    # backward_delta when y = tanh(x) was saved: VPU-only, no transcendental.
    y = y_ref[...].astype(jnp.float32)
    d = d_ref[...].astype(jnp.float32)
    o_ref[...] = ((1.0 - y * y) * d).astype(o_ref.dtype)


def _act_fwd_bwd_kernel(x_ref, d_ref, y_ref, dx_ref):
    # fused forward + backward: x read once, tanh computed once.
    x = x_ref[...].astype(jnp.float32)
    d = d_ref[...].astype(jnp.float32)
    t = jnp.tanh(x)
    y_ref[...] = t.astype(y_ref.dtype)
    dx_ref[...] = ((1.0 - t * t) * d).astype(dx_ref.dtype)


# ---------------------------------------------------------------------------
# Slab plumbing (layout only, no compute hoisting)
# ---------------------------------------------------------------------------
def _to_slab(x):
    """Flatten to a lane-dense [rows, 128] slab. Pads ONLY for ragged sizes."""
    flat = x.reshape(-1)
    n = flat.shape[0]
    pad = (-n) % _LANES
    if pad:
        # Rare ragged-tail path; zeros are benign for tanh. No copy otherwise.
        flat = jnp.concatenate([flat, jnp.zeros((pad,), flat.dtype)])
    return flat.reshape(-1, _LANES), n


def _from_slab(y2d, n, shape):
    if y2d.size == n:
        return y2d.reshape(shape)
    return y2d.reshape(-1)[:n].reshape(shape)


def _row_tiling(rows, streams, dtype):
    """Per-arity block sizing: largest block inside the VMEM budget, but split
    into >= _MIN_GRID blocks when possible (v7x 2-TC split + pipelining)."""
    itemsize = jnp.dtype(dtype).itemsize
    align = 16 if itemsize == 2 else 8          # sublane multiple (bf16 packs 2/row)
    if rows <= align:
        # Block equals full array dims -> always satisfies the (8,128) rule.
        return rows, 1
    # VMEM cap: streams x 2 pipeline buffers of (rows_cap, 128) must fit the budget.
    cap = _BLOCK_VMEM_BUDGET // (streams * 2 * _LANES * itemsize)
    cap = max(align, (cap // align) * align)
    # Aim for ~_MIN_GRID blocks so both TCs get work and DMA overlaps compute.
    desired = pl.cdiv(rows, _MIN_GRID)
    desired = max(align, ((desired + align - 1) // align) * align)
    tr = min(cap, desired)
    return tr, pl.cdiv(rows, tr)


@functools.lru_cache(maxsize=None)
def _build_call(kernel, n_in, n_out, dtype_name, rows, aliases):
    """Cached pallas_call builder keyed by (kernel, arity, dtype, rows, aliases)."""
    dtype = jnp.dtype(dtype_name)
    tr, ngrid = _row_tiling(rows, n_in + n_out, dtype)
    spec = pl.BlockSpec((tr, _LANES), lambda i: (i, 0))
    out_shape = tuple(jax.ShapeDtypeStruct((rows, _LANES), dtype) for _ in range(n_out))
    out_specs = tuple(spec for _ in range(n_out))
    if n_out == 1:
        out_shape, out_specs = out_shape[0], out_specs[0]
    return pl.pallas_call(
        kernel,
        out_shape=out_shape,
        grid_spec=pl.GridSpec(
            grid=(ngrid,),
            in_specs=[spec] * n_in,
            out_specs=out_specs,
        ),
        input_output_aliases=dict(aliases),
        compiler_params=pltpu.CompilerParams(
            dimension_semantics=("parallel",),     # shard row-tiles across v7x's 2 TCs
            vmem_limit_bytes=_VMEM_LIMIT,
        ),
    )


# ---------------------------------------------------------------------------
# Public wrappers (jit'ed: reshape/pad are fused, no per-call retrace)
# ---------------------------------------------------------------------------
@jax.jit
def activation_forward(x):
    x2d, n = _to_slab(x)
    y2d = _build_call(_act_fwd_kernel, 1, 1, jnp.dtype(x.dtype).name,
                      x2d.shape[0], ())(x2d)
    return _from_slab(y2d, n, x.shape)


@jax.jit
def activation_backward_delta(x, delta):
    """foncg(x) * delta  =  (1 - tanh(x)^2) * delta   (module API, from x)."""
    assert x.shape == delta.shape
    x2d, n = _to_slab(x)
    d2d, _ = _to_slab(delta)
    dx2d = _build_call(_act_bwd_kernel, 2, 1, jnp.dtype(x.dtype).name,
                       x2d.shape[0], ())(x2d, d2d)
    return _from_slab(dx2d, n, x.shape)


@jax.jit
def activation_backward_delta_from_y(y, delta):
    """Cheaper backward when y = tanh(x) was saved (VPU-only, dx aliases delta)."""
    assert y.shape == delta.shape
    y2d, n = _to_slab(y)
    d2d, _ = _to_slab(delta)
    dx2d = _build_call(_act_bwd_from_y_kernel, 2, 1, jnp.dtype(y.dtype).name,
                       y2d.shape[0], ((1, 0),))(y2d, d2d)
    return _from_slab(dx2d, n, y.shape)


@jax.jit
def activation_forward_and_backward(x, delta):
    """Fused fwd + bwd: one HBM read of x, one tanh. Returns (y, dx)."""
    assert x.shape == delta.shape
    x2d, n = _to_slab(x)
    d2d, _ = _to_slab(delta)
    y2d, dx2d = _build_call(_act_fwd_bwd_kernel, 2, 2, jnp.dtype(x.dtype).name,
                            x2d.shape[0], ())(x2d, d2d)
    return _from_slab(y2d, n, x.shape), _from_slab(dx2d, n, x.shape)


# ---------------------------------------------------------------------------
# Module-like wrapper mirroring the PyTorch class (no parameters)
# ---------------------------------------------------------------------------
class ActivationPallas:
    def forward(self, x):
        return activation_forward(x)

    def backward_delta(self, x, delta):
        return activation_backward_delta(x, delta)

    # extra (not in the PyTorch API, but the efficient training path):
    def forward_and_backward(self, x, delta):
        return activation_forward_and_backward(x, delta)

    def backward_delta_from_saved(self, y, delta):
        return activation_backward_delta_from_y(y, delta)


if __name__ == "__main__":
    key = jax.random.PRNGKey(0)
    kx, kd = jax.random.split(key)
    # small NCHW input consistent with a conv-net activation layer
    x = jax.random.normal(kx, (2, 4, 16, 16), dtype=jnp.float32)
    delta = jax.random.normal(kd, (2, 4, 16, 16), dtype=jnp.float32)

    mod = ActivationPallas()

    y = mod.forward(x)
    jax.block_until_ready(y)

    g = mod.backward_delta(x, delta)
    jax.block_until_ready(g)

    y_f, g_f = mod.forward_and_backward(x, delta)
    jax.block_until_ready((y_f, g_f))

    g_saved = mod.backward_delta_from_saved(y, delta)
    jax.block_until_ready(g_saved)

    # correctness checks against plain-JAX references
    y_ref = jnp.tanh(x)
    g_ref = (1.0 - jnp.tanh(x) ** 2) * delta
    assert y.shape == x.shape and g.shape == x.shape
    assert jnp.allclose(y, y_ref, atol=1e-6), "forward mismatch"
    assert jnp.allclose(g, g_ref, atol=1e-6), "backward_delta mismatch"
    assert jnp.allclose(y_f, y_ref, atol=1e-6), "fused forward mismatch"
    assert jnp.allclose(g_f, g_ref, atol=1e-6), "fused backward mismatch"
    assert jnp.allclose(g_saved, g_ref, atol=1e-6), "saved-y backward mismatch"

    print("KERNEL_OK")
</pallas_src>

<mosaic_0001>
module attributes {stable_mosaic.version = 11 : i64} {
  func.func @_act_fwd_kernel(%arg0: i32, %arg1: memref<8x128xf32, #tpu.memory_space<vmem>>, %arg2: memref<8x128xf32, #tpu.memory_space<vmem>>) attributes {dimension_semantics = [#tpu.dimension_semantics<parallel>], iteration_bounds = array<i64: 2>, scalar_prefetch = 0 : i64, scratch_operands = 0 : i64, tpu.core_type = #tpu.core_type<tc>, window_params = [{transform_indices = @transform_0, window_bounds = array<i64: 8, 128>}, {transform_indices = @transform_1, window_bounds = array<i64: 8, 128>}]} {
    %c0 = arith.constant 0 : index
    %c0_0 = arith.constant 0 : index
    %0 = vector.load %arg1[%c0, %c0_0] : memref<8x128xf32, #tpu.memory_space<vmem>>, vector<8x128xf32>
    %1 = math.tanh %0 : vector<8x128xf32>
    %c0_1 = arith.constant 0 : index
    %c0_2 = arith.constant 0 : index
    %2 = vector.load %arg2[%c0_1, %c0_2] : memref<8x128xf32, #tpu.memory_space<vmem>>, vector<8x128xf32>
    tpu.vector_store %arg2[%c0_1, %c0_2], %1 {strides = array<i32>} : memref<8x128xf32, #tpu.memory_space<vmem>>, vector<8x128xf32>,
    return
  }
  func.func @transform_0(%arg0: i32) -> (i32, i32) {
    %c0_i32 = arith.constant 0 : i32
    %c0_i32_0 = arith.constant 0 : i32
    return %arg0, %c0_i32 : i32, i32
  }
  func.func @transform_1(%arg0: i32) -> (i32, i32) {
    %c0_i32 = arith.constant 0 : i32
    %c0_i32_0 = arith.constant 0 : i32
    return %arg0, %c0_i32 : i32, i32
  }
}

</mosaic_0001>

<llo_original>
// kernel: activation_forward.1
$region0: #{activation_forward.1}
  #allocation0 [shape = 'u32[]', space=smem, size = 0x4, offset = 0x4, fixed_abs, tag = 'smem constant byte address 0x4 - core index']
  #allocation1 [shape = 'u32[72,128]{1,0:T(1,128)}', space=vmem, size = 0x9000, scoped, tag = 'internal scratch']
  %s0 = inlined_call_operand.vmem [shape: f32[16,128], index: 0, kind: input, shape index: {}]
  %s1 = inlined_call_operand.vmem [shape: f32[16,128], index: 1, kind: output, shape index: {}]
  %s2 = sld [smem:[#allocation0]]
  $region37: #{activation_forward.1} parent=0
    _
  %s4 = ssub.s32 1, %s2
  %s5 = scalar_select 0, %s4, %s2
  loop: start=0, step=1, limit=4
  $region2: #{activation_forward.1} parent=0 // loop_pre_header
    _
  $region3: #{activation_forward.1} parent=0 // loop_header
    %s7 = sphi 0, %s11
    %p8 = scmp.ge.s32.totalorder %s7, 4
    %s17 = sphi 0, %s19
    %s20 = sphi 0, %s17
    %s21 = sphi 0, %s20
    %s37 = sphi 0, %s21
    %s43 = sphi 0, %s45
    %s46 = sphi 0, %s43
    %s47 = sphi 0, %s46
    %s63 = sphi 0, %s47
  $region4: #{activation_forward.1} parent=0 // loop_header_branch
    %10 = sbr.rel (%p8) target = $region8
  $region5: #{activation_forward.1} parent=0 // loop_body
    %s12 = ssub.s32 %s7, 1
    %s13 = ssub.s32 %s7, 2
    %s14 = sadd.s32 %s7, 1
    %s15 = ssub.s32 %s7, %s14
    %p16 = scmp.eq.s32.totalorder %s15, 0
    %s18 = sadd.s32 %s17, 1
    %s19 = scalar_select %p16, %s17, %s18
    %p22 = pneg %p16
    %p23 = scmp.eq.s32.totalorder %s7, 1
    %p24 = por %p22, %p23
    %p25 = scmp.ne.s32.totalorder %s17, %s20
    %p26 = scmp.eq.s32.totalorder %s7, 0
    %p27 = por %p25, %p26
    %p28 = scmp.ne.s32.totalorder %s17, %s20
    %p29 = scmp.eq.s32.totalorder %s12, 1
    %p30 = por %p28, %p29
    %p31 = scmp.ne.s32.totalorder %s20, %s21
    %p32 = scmp.eq.s32.totalorder %s12, 0
    %p33 = por %p31, %p32
    %p34 = scmp.ne.s32.totalorder %s20, %s21
    %p35 = scmp.eq.s32.totalorder %s13, 1
    %p36 = por %p34, %p35
    %p38 = scmp.ne.s32.totalorder %s21, %s37
    %p39 = scmp.eq.s32.totalorder %s13, 0
    %p40 = por %p38, %p39
    %s41 = ssub.s32 %s7, %s14
    %p42 = scmp.eq.s32.totalorder %s41, 0
    %s44 = sadd.s32 %s43, 1
    %s45 = scalar_select %p42, %s43, %s44
    %p48 = pneg %p42
    %p49 = scmp.eq.s32.totalorder %s7, 1
    %p50 = por %p48, %p49
    %p51 = scmp.ne.s32.totalorder %s43, %s46
    %p52 = scmp.eq.s32.totalorder %s7, 0
    %p53 = por %p51, %p52
    %p54 = scmp.ne.s32.totalorder %s43, %s46
    %p55 = scmp.eq.s32.totalorder %s12, 1
    %p56 = por %p54, %p55
    %p57 = scmp.ne.s32.totalorder %s46, %s47
    %p58 = scmp.eq.s32.totalorder %s12, 0
    %p59 = por %p57, %p58
    %p60 = scmp.ne.s32.totalorder %s46, %s47
    %p61 = scmp.eq.s32.totalorder %s13, 1
    %p62 = por %p60, %p61
    %p64 = scmp.ne.s32.totalorder %s47, %s63
    %p65 = scmp.eq.s32.totalorder %s13, 0
    %p66 = por %p64, %p65
    %p67 = scmp.le.s32.totalorder 1, %s7
    %p68 = scmp.lt.s32.totalorder %s7, 3
    %p69 = pnand %p67, %p68
    %p70 = pneg %p69
    // Predicated region
    $region9: #{activation_forward.1} parent=5 // pred_check
      _
    $region10: #{activation_forward.1} parent=5 // pred_check_branch
      %72 = sbr.rel (%p69) target = $region12
    $region11: #{activation_forward.1} parent=5 // pred_region
      %s73 = ssub.s32 %s7, 1
    $region12: #{activation_forward.1} parent=5 // pred_fallthru
      _
    %p74 = scmp.lt.s32.totalorder %s7, 2
    // Predicated region
    $region13: #{activation_forward.1} parent=5 // pred_check
      %p75 = pneg %p74
    $region14: #{activation_forward.1} parent=5 // pred_check_branch
      %77 = sbr.rel (%p75) target = $region16
    $region15: #{activation_forward.1} parent=5 // pred_region
      // Predicated region
      $region17: #{activation_forward.1} parent=15 // pred_check
        %p78 = pneg %p27
      $region18: #{activation_forward.1} parent=15 // pred_check_branch
        %80 = sbr.rel (%p78) target = $region20
      $region19: #{activation_forward.1} parent=15 // pred_region
        %p81 = scmp.lt.s32.totalorder %s7, 1
        %s82 = scalar_select %p81, %s7, 1
        %s83 = smul.addr %s82, 8
        %s84 = scalar_lea.vmem %s0, %s83
      $region20: #{activation_forward.1} parent=15 // pred_fallthru
        _
    $region16: #{activation_forward.1} parent=5 // pred_fallthru
      _
    %p85 = scmp.le.s32.totalorder 1, %s7
    %p86 = scmp.lt.s32.totalorder %s7, 3
    %p87 = pnand %p85, %p86
    %p88 = pneg %p87
    // Predicated region
    $region21: #{activation_forward.1} parent=5 // pred_check
      _
    $region22: #{activation_forward.1} parent=5 // pred_check_branch
      %90 = sbr.rel (%p87) target = $region24
    $region23: #{activation_forward.1} parent=5 // pred_region
      %s91 = ssub.s32 %s7, 1
      %p92 = scmp.lt.s32.totalorder %s12, 1
      %s93 = scalar_select %p92, %s12, 1
      %s94 = smul.addr %s93, 8
      %s95 = scalar_lea.vmem %s0, %s94
      %p96 = pneg %p33
      %p97 = pneg %p30
      %p98 = pneg %p59
      %p99 = pneg %p56
      %p100 = scmp.lt.s32.totalorder %s12, 1
      %s101 = scalar_select %p100, %s12, 1
      %s102 = smul.addr %s101, 8
      %s103 = scalar_lea.vmem %s1, %s102
      %p104 = scmp.lt.s32.totalorder %s12, 1
      %s105 = scalar_select %p104, %s12, 1
      %s106 = smul.addr %s105, 8
      %s107 = scalar_lea.vmem %s0, %s106
      %p108 = scmp.lt.s32.totalorder %s12, 1
      %s109 = scalar_select %p108, %s12, 1
      %s110 = smul.addr %s109, 8
      %s111 = scalar_lea.vmem %s1, %s110
      %v112 = vld [vmem:[%s107] sm:$0xff]
      %v113 = vtanh.pop %v112
      %114 = vst [vmem:[%s111] sm:$0xff] %v113
      %p115 = scmp.lt.s32.totalorder %s12, 1
      %s116 = scalar_select %p115, %s12, 1
      %s117 = smul.addr %s116, 8
      %s118 = scalar_lea.vmem %s1, %s117
      // Predicated region
      $region25: #{activation_forward.1} parent=23 // pred_check
        %p119 = pneg %p56
      $region26: #{activation_forward.1} parent=23 // pred_check_branch
        %121 = sbr.rel (%p119) target = $region28
      $region27: #{activation_forward.1} parent=23 // pred_region
        _
      $region28: #{activation_forward.1} parent=23 // pred_fallthru
        _
    $region24: #{activation_forward.1} parent=5 // pred_fallthru
      _
    %p122 = scmp.le.s32.totalorder 2, %s7
    // Predicated region
    $region29: #{activation_forward.1} parent=5 // pred_check
      %p123 = pneg %p122
    $region30: #{activation_forward.1} parent=5 // pred_check_branch
      %125 = sbr.rel (%p123) target = $region32
    $region31: #{activation_forward.1} parent=5 // pred_region
      %s126 = ssub.s32 %s7, 2
      // Predicated region
      $region33: #{activation_forward.1} parent=31 // pred_check
        %p127 = pneg %p62
      $region34: #{activation_forward.1} parent=31 // pred_check_branch
        %129 = sbr.rel (%p127) target = $region36
      $region35: #{activation_forward.1} parent=31 // pred_region
        %p130 = scmp.lt.s32.totalorder %s13, 1
        %s131 = scalar_select %p130, %s13, 1
        %s132 = smul.addr %s131, 8
        %s133 = scalar_lea.vmem %s1, %s132
      $region36: #{activation_forward.1} parent=31 // pred_fallthru
        _
    $region32: #{activation_forward.1} parent=5 // pred_fallthru
      _
  $region6: #{activation_forward.1} parent=0 // loop_footer
    %s11 = sadd.s32 1, %s7
  $region7: #{activation_forward.1} parent=0 // loop_footer_branch
    %6 = sbr.rel target = $region3
  $region8: #{activation_forward.1} parent=0 // loop_exit
    _

</llo_original>
